<compile_context>
chip_gen: v6e
topology: v6e:2x2x1
jax: 0.10.0
libtpu: 0.0.40
codegen_flags: <defaults>
</compile_context>

<pallas_src>
import jax
import jax.numpy as jnp
from jax.experimental import pallas as pl
from jax.experimental.pallas import tpu as pltpu


# Large finite negative fill (avoids inf - inf = NaN inside the kernel).
_NEG_FILL = -1e30


# ---------------------------------------------------------------------------
# Kernel
# ---------------------------------------------------------------------------
def _make_kernel(TQ, D, compute_dtype, precision, slab_output):
    def kernel(xk_ref, bias_ref, out_ref):
        # xk_ref:   (BT, T, D)  resident keys/values (full sequence, x itself)
        # bias_ref: (BT, 1, T)  f32 additive key-mask bias
        # out_ref:  (5, BT, TQ, D) if slab_output else (BT, TQ, 5*D)
        q0 = pl.multiple_of(pl.program_id(1) * TQ, TQ)
        xk = xk_ref[...]                          # (BT, T,  D)
        xq = xk_ref[:, pl.ds(q0, TQ), :]          # (BT, TQ, D) — no 2nd HBM read
        bias = bias_ref[...]                      # (BT, 1,  T)
        out_dtype = out_ref.dtype

        if compute_dtype is not None:
            xq_c = xq.astype(compute_dtype)
            xk_c = xk.astype(compute_dtype)
        else:
            xq_c, xk_c = xq, xk

        # score = xq @ xk^T (contraction over D), f32 accumulation on the MXU,
        # batched dot_general -> no explicit transpose of xk.
        score = jnp.einsum("bqd,bkd->bqk", xq_c, xk_c,
                           preferred_element_type=jnp.float32,
                           precision=precision)               # (BT, TQ, T)
        score = score + bias                                  # additive key mask

        # Numerically stable softmax over keys.
        m = jnp.max(score, axis=-1, keepdims=True)
        e = jnp.exp(score - m)
        denom = jnp.sum(e, axis=-1, keepdims=True)
        r = pl.reciprocal(denom, approx=True)                 # EUP slot
        r = r * (2.0 - denom * r)                             # Newton -> ~f32
        attn = (e * r).astype(xk_c.dtype)

        # context = attn @ x, f32 accumulation on the MXU.
        ctx = jnp.einsum("bqk,bkd->bqd", attn, xk_c,
                         preferred_element_type=jnp.float32,
                         precision=precision).astype(out_dtype)
        xq = xq.astype(out_dtype)

        if slab_output:
            # (5, BT, TQ, D): every store covers the full last dim -> lane-dense
            # unmasked vst even when D % 128 != 0.
            out_ref[0] = xq
            out_ref[1] = ctx
            out_ref[2] = xq + ctx
            out_ref[3] = xq - ctx
            out_ref[4] = xq * ctx
        else:
            # D % 128 == 0: k*D offsets are lane-aligned -> unmasked vst.
            out_ref[:, :, 0 * D:1 * D] = xq
            out_ref[:, :, 1 * D:2 * D] = ctx
            out_ref[:, :, 2 * D:3 * D] = xq + ctx
            out_ref[:, :, 3 * D:4 * D] = xq - ctx
            out_ref[:, :, 4 * D:5 * D] = xq * ctx

    return kernel


# ---------------------------------------------------------------------------
# Generation-aware planning
# ---------------------------------------------------------------------------
def _vmem_capacity_bytes():
    try:
        return int(pltpu.get_tpu_info().vmem_capacity_bytes)
    except Exception:
        return 64 << 20  # conservative fallback: never over-request


def _vmem_budget(phys):
    if phys <= (64 << 20):
        # v7x (64 MiB/TC): leave headroom for Mosaic internal scratch/semaphores.
        return min(52 << 20, (phys * 13) // 16)
    # v5e / v6e (128 MiB physical): use most of it.
    return min(112 << 20, (phys * 7) // 8)


def _vmem_estimate(BT, TQ, T, D, itemsize, k_buffers):
    """Per-step VMEM footprint (no double-counting: buffer counts explicit)."""
    k_block = k_buffers * BT * T * D * itemsize        # resident K/V block
    bias = k_buffers * BT * T * 4                      # f32 key-mask bias
    out = 2 * BT * TQ * 5 * D * itemsize               # double-buffered output
    qslice = BT * TQ * D * itemsize                    # in-kernel query tile
    score = 2 * BT * TQ * T * 4                        # score + exp (f32)
    attn = BT * TQ * T * itemsize                      # attn cast for 2nd matmul
    ctx = BT * TQ * D * (4 + itemsize)                 # f32 acc + cast
    return k_block + bias + out + qslice + score + attn + ctx


def _plan_tiles(B, T, D, itemsize, budget, phys):
    """Return (BT, TQ, k_buffers, vmem_estimate)."""
    cands = []
    for c in (512, 256, 128):
        if T > c and T % c == 0:
            if c == 512 and phys <= (64 << 20):
                continue  # v7x: cap the query tile at 256
            cands.append(c)
    cands.append(T)  # full-sequence tile (also the tiny-shape regime)

    for TQ in cands:                      # largest tile that fits wins
        for k_buf in (2, 1):              # prefer double-buffered K, else single
            est = _vmem_estimate(1, TQ, T, D, itemsize, k_buf)
            if est <= budget:
                BT = 1
                if TQ == T and B > 1:
                    # Tiny-shape regime: fold the whole batch into one grid
                    # step to amortize the ~0.35us per-step overhead.
                    est_b = _vmem_estimate(B, TQ, T, D, itemsize, k_buf)
                    if est_b <= budget and B * T * 5 * D * itemsize <= (4 << 20):
                        BT, est = B, est_b
                return BT, TQ, k_buf, est

    # Nothing fits the budget (very large T): smallest-footprint plan.
    # TODO(synk): flash-style streamed-K loop (see module docstring).
    TQ = min(cands)
    return 1, TQ, 1, _vmem_estimate(1, TQ, T, D, itemsize, 1)


# ---------------------------------------------------------------------------
# Wrapper
# ---------------------------------------------------------------------------
def biattention(x, mask, *, compute_dtype=None, precision=None):
    """x: (B, T, D) float; mask: (B, T) (1=keep, 0=mask key). -> (B, T, 5*D)."""
    B, T, D = x.shape
    itemsize = jnp.dtype(x.dtype).itemsize
    phys = _vmem_capacity_bytes()
    budget = _vmem_budget(phys)
    BT, TQ, k_buf, est = _plan_tiles(B, T, D, itemsize, budget, phys)
    grid = (B // BT, T // TQ)

    # Additive key bias, computed once outside the kernel hot path.
    bias = jnp.where(mask.reshape(B, 1, T) == 0,
                     jnp.float32(_NEG_FILL), jnp.float32(0.0))

    # Resident K/V block + bias are constant along the inner q axis; on tight
    # VMEM (v7x) single-buffer them instead of spilling.
    k_kwargs = dict(pipeline_mode=pl.Buffered(1)) if k_buf == 1 else {}
    in_specs = [
        pl.BlockSpec((BT, T, D), lambda b, q: (b, 0, 0), **k_kwargs),
        pl.BlockSpec((BT, 1, T), lambda b, q: (b, 0, 0), **k_kwargs),
    ]

    slab = (D % 128) != 0
    if slab:
        out_shape = jax.ShapeDtypeStruct((5, B, T, D), x.dtype)
        out_specs = pl.BlockSpec((5, BT, TQ, D), lambda b, q: (0, b, q, 0))
    else:
        out_shape = jax.ShapeDtypeStruct((B, T, 5 * D), x.dtype)
        out_specs = pl.BlockSpec((BT, TQ, 5 * D), lambda b, q: (b, q, 0))

    # Megacore: shard the batch axis across TCs when possible so each core
    # reads a disjoint resident K block (avoids duplicated K HBM reads on v7x).
    dims = ("parallel", "arbitrary") if grid[0] >= 2 else ("arbitrary", "parallel")
    vmem_limit = int(min(budget, max(est * 5 // 4 + (2 << 20), 32 << 20)))

    out = pl.pallas_call(
        _make_kernel(TQ, D, compute_dtype, precision, slab),
        out_shape=out_shape,
        grid_spec=pltpu.PrefetchScalarGridSpec(
            num_scalar_prefetch=0,
            grid=grid,
            in_specs=in_specs,
            out_specs=out_specs,
        ),
        compiler_params=pltpu.CompilerParams(
            dimension_semantics=dims,
            vmem_limit_bytes=vmem_limit),
    )(x, bias)

    if slab:
        # (5, B, T, D) -> (B, T, 5*D): layout plumbing outside the kernel.
        out = jnp.transpose(out, (1, 2, 0, 3)).reshape(B, T, 5 * D)
    return out


# ---------------------------------------------------------------------------
# Pure-JAX reference (mirrors the PyTorch forward)
# ---------------------------------------------------------------------------
def _reference(x, mask):
    score = jnp.einsum("btd,bsd->bts", x, x)
    score = jnp.where(mask[:, None, :] == 0, -jnp.inf, score)
    attn = jax.nn.softmax(score, axis=2)
    ctx = jnp.einsum("bts,bsd->btd", attn, x)
    return jnp.concatenate((x, ctx, x + ctx, x - ctx, x * ctx), axis=-1)


if __name__ == "__main__":
    key = jax.random.PRNGKey(0)
    # Case 1 exercises the lane-dense slab path (D % 128 != 0);
    # case 2 exercises the aligned slice-store path (D % 128 == 0).
    cases = (((2, 8, 32), 1e-5), ((2, 8, 128), 1e-4))
    for (B, T, D), tol in cases:
        key, kx, km = jax.random.split(key, 3)
        x = jax.random.normal(kx, (B, T, D), dtype=jnp.float32)
        # mask: mostly ones with zeros; guarantee >=1 valid key per row
        # (fully-masked rows are undefined in the original module: -inf softmax).
        mask = (jax.random.uniform(km, (B, T)) > 0.3).astype(jnp.int32)
        mask = mask.at[:, 0].set(1)

        out = biattention(x, mask)
        jax.block_until_ready(out)

        ref = _reference(x, mask.astype(jnp.float32))
        assert out.shape == (B, T, 5 * D)
        err = float(jnp.max(jnp.abs(out - ref)))
        assert jnp.allclose(out, ref, atol=tol, rtol=tol), (B, T, D, err)

    print("KERNEL_OK")
</pallas_src>

<mosaic_0001>
module attributes {stable_mosaic.version = 11 : i64} {
  func.func @kernel(%arg0: i32, %arg1: i32, %arg2: memref<2x8x32xf32, #tpu.memory_space<vmem>>, %arg3: memref<2x1x8xf32, #tpu.memory_space<vmem>>, %arg4: memref<5x2x8x32xf32, #tpu.memory_space<vmem>>) attributes {dimension_semantics = [#tpu.dimension_semantics<arbitrary>, #tpu.dimension_semantics<parallel>], iteration_bounds = array<i64: 1, 1>, scalar_prefetch = 0 : i64, scratch_operands = 0 : i64, tpu.core_type = #tpu.core_type<tc>, window_params = [{transform_indices = @transform_0, window_bounds = array<i64: 2, 8, 32>}, {transform_indices = @transform_1, window_bounds = array<i64: 2, 1, 8>}, {transform_indices = @transform_2, window_bounds = array<i64: 5, 2, 8, 32>}]} {
    %c8_i32 = arith.constant 8 : i32
    %0 = arith.muli %arg1, %c8_i32 : i32
    %1 = tpu.assume_multiple %0, 8 : i32
    %c0 = arith.constant 0 : index
    %c0_0 = arith.constant 0 : index
    %c0_1 = arith.constant 0 : index
    %2 = vector.load %arg2[%c0, %c0_0, %c0_1] : memref<2x8x32xf32, #tpu.memory_space<vmem>>, vector<2x8x32xf32>
    %c0_2 = arith.constant 0 : index
    %3 = arith.index_cast %1 : i32 to index
    %c0_3 = arith.constant 0 : index
    %4 = vector.load %arg2[%c0_2, %3, %c0_3] : memref<2x8x32xf32, #tpu.memory_space<vmem>>, vector<2x8x32xf32>
    %c0_4 = arith.constant 0 : index
    %c0_5 = arith.constant 0 : index
    %c0_6 = arith.constant 0 : index
    %5 = vector.load %arg3[%c0_4, %c0_5, %c0_6] : memref<2x1x8xf32, #tpu.memory_space<vmem>>, vector<2x1x8xf32>
    "tpu.trace_start"() <{level = 10 : i32, message = "bqd,bkd->bqk"}> : () -> ()
    %cst = arith.constant dense<0.000000e+00> : vector<2x8x8xf32>
    %6 = tpu.matmul %4, %2, %cst {dimension_numbers = #tpu.dot_dimension_numbers<[2], [2], [1], [1], [0, 0, 0, 1, 1, 1], [0], [0]>} : vector<2x8x32xf32>, vector<2x8x32xf32>, vector<2x8x8xf32> -> vector<2x8x8xf32>
    "tpu.trace_stop"() : () -> ()
    %7 = vector.broadcast %5 : vector<2x1x8xf32> to vector<2x8x8xf32>
    %8 = arith.addf %6, %7 : vector<2x8x8xf32>
    %cst_7 = arith.constant dense<0xFF800000> : vector<2x8xf32>
    %9 = vector.multi_reduction <maximumf>, %8, %cst_7 [2] : vector<2x8x8xf32> to vector<2x8xf32>
    %10 = vector.shape_cast %9 : vector<2x8xf32> to vector<2x8x1xf32>
    %11 = vector.broadcast %10 : vector<2x8x1xf32> to vector<2x8x8xf32>
    %12 = arith.subf %8, %11 : vector<2x8x8xf32>
    %13 = math.exp %12 : vector<2x8x8xf32>
    %cst_8 = arith.constant dense<0.000000e+00> : vector<2x8xf32>
    %14 = vector.multi_reduction <add>, %13, %cst_8 [2] : vector<2x8x8xf32> to vector<2x8xf32>
    %15 = vector.shape_cast %14 : vector<2x8xf32> to vector<2x8x1xf32>
    %16 = tpu.reciprocal %15 {approx = true} : vector<2x8x1xf32> -> vector<2x8x1xf32>
    %17 = arith.mulf %15, %16 : vector<2x8x1xf32>
    %cst_9 = arith.constant 2.000000e+00 : f32
    %18 = vector.broadcast %cst_9 : f32 to vector<2x8x1xf32>
    %19 = arith.subf %18, %17 : vector<2x8x1xf32>
    %20 = arith.mulf %16, %19 : vector<2x8x1xf32>
    %21 = vector.broadcast %20 : vector<2x8x1xf32> to vector<2x8x8xf32>
    %22 = arith.mulf %13, %21 : vector<2x8x8xf32>
    "tpu.trace_start"() <{level = 10 : i32, message = "bqk,bkd->bqd"}> : () -> ()
    %cst_10 = arith.constant dense<0.000000e+00> : vector<2x8x32xf32>
    %23 = tpu.matmul %22, %2, %cst_10 {dimension_numbers = #tpu.dot_dimension_numbers<[2], [1], [1], [2], [0, 0, 0, 1, 1, 2], [0], [0]>} : vector<2x8x8xf32>, vector<2x8x32xf32>, vector<2x8x32xf32> -> vector<2x8x32xf32>
    "tpu.trace_stop"() : () -> ()
    %c0_11 = arith.constant 0 : index
    %c0_12 = arith.constant 0 : index
    %c0_13 = arith.constant 0 : index
    %c0_14 = arith.constant 0 : index
    %24 = vector.load %arg4[%c0_11, %c0_12, %c0_13, %c0_14] : memref<5x2x8x32xf32, #tpu.memory_space<vmem>>, vector<1x2x8x32xf32>
    %25 = vector.shape_cast %24 : vector<1x2x8x32xf32> to vector<2x8x32xf32>
    %26 = vector.shape_cast %4 : vector<2x8x32xf32> to vector<1x2x8x32xf32>
    tpu.vector_store %arg4[%c0_11, %c0_12, %c0_13, %c0_14], %26 {strides = array<i32>} : memref<5x2x8x32xf32, #tpu.memory_space<vmem>>, vector<1x2x8x32xf32>,
    %c1 = arith.constant 1 : index
    %c0_15 = arith.constant 0 : index
    %c0_16 = arith.constant 0 : index
    %c0_17 = arith.constant 0 : index
    %27 = vector.load %arg4[%c1, %c0_15, %c0_16, %c0_17] : memref<5x2x8x32xf32, #tpu.memory_space<vmem>>, vector<1x2x8x32xf32>
    %28 = vector.shape_cast %27 : vector<1x2x8x32xf32> to vector<2x8x32xf32>
    %29 = vector.shape_cast %23 : vector<2x8x32xf32> to vector<1x2x8x32xf32>
    tpu.vector_store %arg4[%c1, %c0_15, %c0_16, %c0_17], %29 {strides = array<i32>} : memref<5x2x8x32xf32, #tpu.memory_space<vmem>>, vector<1x2x8x32xf32>,
    %30 = arith.addf %4, %23 : vector<2x8x32xf32>
    %c2 = arith.constant 2 : index
    %c0_18 = arith.constant 0 : index
    %c0_19 = arith.constant 0 : index
    %c0_20 = arith.constant 0 : index
    %31 = vector.load %arg4[%c2, %c0_18, %c0_19, %c0_20] : memref<5x2x8x32xf32, #tpu.memory_space<vmem>>, vector<1x2x8x32xf32>
    %32 = vector.shape_cast %31 : vector<1x2x8x32xf32> to vector<2x8x32xf32>
    %33 = vector.shape_cast %30 : vector<2x8x32xf32> to vector<1x2x8x32xf32>
    tpu.vector_store %arg4[%c2, %c0_18, %c0_19, %c0_20], %33 {strides = array<i32>} : memref<5x2x8x32xf32, #tpu.memory_space<vmem>>, vector<1x2x8x32xf32>,
    %34 = arith.subf %4, %23 : vector<2x8x32xf32>
    %c3 = arith.constant 3 : index
    %c0_21 = arith.constant 0 : index
    %c0_22 = arith.constant 0 : index
    %c0_23 = arith.constant 0 : index
    %35 = vector.load %arg4[%c3, %c0_21, %c0_22, %c0_23] : memref<5x2x8x32xf32, #tpu.memory_space<vmem>>, vector<1x2x8x32xf32>
    %36 = vector.shape_cast %35 : vector<1x2x8x32xf32> to vector<2x8x32xf32>
    %37 = vector.shape_cast %34 : vector<2x8x32xf32> to vector<1x2x8x32xf32>
    tpu.vector_store %arg4[%c3, %c0_21, %c0_22, %c0_23], %37 {strides = array<i32>} : memref<5x2x8x32xf32, #tpu.memory_space<vmem>>, vector<1x2x8x32xf32>,
    %38 = arith.mulf %4, %23 : vector<2x8x32xf32>
    %c4 = arith.constant 4 : index
    %c0_24 = arith.constant 0 : index
    %c0_25 = arith.constant 0 : index
    %c0_26 = arith.constant 0 : index
    %39 = vector.load %arg4[%c4, %c0_24, %c0_25, %c0_26] : memref<5x2x8x32xf32, #tpu.memory_space<vmem>>, vector<1x2x8x32xf32>
    %40 = vector.shape_cast %39 : vector<1x2x8x32xf32> to vector<2x8x32xf32>
    %41 = vector.shape_cast %38 : vector<2x8x32xf32> to vector<1x2x8x32xf32>
    tpu.vector_store %arg4[%c4, %c0_24, %c0_25, %c0_26], %41 {strides = array<i32>} : memref<5x2x8x32xf32, #tpu.memory_space<vmem>>, vector<1x2x8x32xf32>,
    return
  }
  func.func @transform_0(%arg0: i32, %arg1: i32) -> (i32, i32, i32) {
    %c0_i32 = arith.constant 0 : i32
    %c0_i32_0 = arith.constant 0 : i32
    %c0_i32_1 = arith.constant 0 : i32
    return %arg0, %c0_i32, %c0_i32_0 : i32, i32, i32
  }
  func.func @transform_1(%arg0: i32, %arg1: i32) -> (i32, i32, i32) {
    %c0_i32 = arith.constant 0 : i32
    %c0_i32_0 = arith.constant 0 : i32
    %c0_i32_1 = arith.constant 0 : i32
    return %arg0, %c0_i32, %c0_i32_0 : i32, i32, i32
  }
  func.func @transform_2(%arg0: i32, %arg1: i32) -> (i32, i32, i32, i32) {
    %c0_i32 = arith.constant 0 : i32
    %c0_i32_0 = arith.constant 0 : i32
    %c0_i32_1 = arith.constant 0 : i32
    return %c0_i32, %arg0, %arg1, %c0_i32_0 : i32, i32, i32, i32
  }
}

</mosaic_0001>

<llo_original>
// kernel: tpu_custom_call.1
$region0: #{tpu_custom_call.1}
  #allocation0 [shape = 'u32[]', space=smem, size = 0x4, offset = 0x4, fixed_abs, tag = 'smem constant byte address 0x4 - core index']
  #allocation1 [shape = 'u32[144,128]{1,0:T(1,128)}', space=vmem, size = 0x12000, scoped, tag = 'internal scratch']
  %s0 = inlined_call_operand.hbm [shape: f32[2,8,32], index: 0, kind: input, shape index: {}]
  %s1 = inlined_call_operand.hbm [shape: f32[2,1,8], index: 1, kind: input, shape index: {}]
  %s2 = inlined_call_operand.hbm [shape: f32[5,2,8,32], index: 2, kind: output, shape index: {}]
  %s3 = sld [smem:[#allocation0]]
  $region26: #{tpu_custom_call.1} parent=0
    _
  %s5 = ssub.s32 1, %s3
  %s6 = scalar_select 0, %s5, %s3
  $region1: #{tpu_custom_call.1} parent=0
    #allocation2 [shape = 'u8[8192]{0}', space=vmem, size = 0x2000, scoped, tag = 'input window, operand 0, single buffered']
    #allocation3 [shape = 's32[1]{0}', space=sflag, size = 0x4, scoped, tag = 'scoped memory for tpu_custom_call.1']
    #allocation4 [shape = 's32[1]{0}', space=sflag, size = 0x4, scoped, tag = 'scoped memory for tpu_custom_call.1']
    #allocation5 [shape = 'u8[1024]{0}', space=vmem, size = 0x400, scoped, tag = 'input window, operand 1, single buffered']
    #allocation6 [shape = 's32[1]{0}', space=sflag, size = 0x4, scoped, tag = 'scoped memory for tpu_custom_call.1']
    #allocation7 [shape = 'u8[40960]{0}', space=vmem, size = 0xa000, scoped, tag = 'output window, operand 0, single buffered']
    %7 = vsyncpa [#allocation3], 0
    %8 = vsyncpa [#allocation6], 0
    %9 = vsyncpa [#allocation4], 0
    // Predicated region
    $region2: #{tpu_custom_call.1} parent=1 // pred_check
      _
    $region3: #{tpu_custom_call.1} parent=1 // pred_check_branch
      %11 = sbr.rel (0) target = $region5
    $region4: #{tpu_custom_call.1} parent=1 // pred_region
      %s13 = ssub.s32 256, 256
      %14 = vsyncadd [#allocation3], %s13
      %s15 = sshll.u32 [#allocation2], 4
      %s16 = int_to_ptr.vmem [resolvable:$true] %s15
      %21 = dma.hbm_to_vmem [thread:$0]  %s0, 256, %s16, [#allocation3], 128, 128, 8
    $region5: #{tpu_custom_call.1} parent=1 // pred_fallthru
      _
    // Predicated region
    $region6: #{tpu_custom_call.1} parent=1 // pred_check
      _
    $region7: #{tpu_custom_call.1} parent=1 // pred_check_branch
      %23 = sbr.rel (0) target = $region9
    $region8: #{tpu_custom_call.1} parent=1 // pred_region
      %s25 = ssub.s32 32, 32
      %26 = vsyncadd [#allocation6], %s25
      %s27 = sshll.u32 [#allocation5], 4
      %s28 = int_to_ptr.vmem [resolvable:$true] %s27
      %33 = dma.hbm_to_vmem [thread:$0]  %s1, 32, %s28, [#allocation6], 16, 16, 1
    $region9: #{tpu_custom_call.1} parent=1 // pred_fallthru
      _
    // Predicated region
    $region10: #{tpu_custom_call.1} parent=1 // pred_check
      _
    $region11: #{tpu_custom_call.1} parent=1 // pred_check_branch
      %35 = sbr.rel (0) target = $region13
    $region12: #{tpu_custom_call.1} parent=1 // pred_region
      %36 = dma.done [#allocation3], 256
    $region13: #{tpu_custom_call.1} parent=1 // pred_fallthru
      _
    // Predicated region
    $region14: #{tpu_custom_call.1} parent=1 // pred_check
      _
    $region15: #{tpu_custom_call.1} parent=1 // pred_check_branch
      %38 = sbr.rel (0) target = $region17
    $region16: #{tpu_custom_call.1} parent=1 // pred_region
      %39 = dma.done [#allocation6], 32
    $region17: #{tpu_custom_call.1} parent=1 // pred_fallthru
      _
    %s40 = smul.u32 0, 8
    %v41 = vld [vmem:[#allocation2] sm:$0xff]
    %v42 = vld [vmem:[#allocation2 + $0x8] sm:$0xff]
    %s43 = scalar_lea.vmem [#allocation2], %s40
    %v44 = vld [vmem:[%s43] sm:$0xff]
    %v45 = vld [vmem:[%s43 + $0x8] sm:$0xff]
    %v46 = vld [vmem:[#allocation5] sm:$0x1]
    %v47 = vld [vmem:[#allocation5 + $0x1] sm:$0x1]
    %v50 = vlaneseq
    %v51 = vshrl.u32 %v50, 7
    %v52 = vsub.s32 0, %v51
    %v53 = vrot.slane %v46, %v52
    %v54 = vlaneseq
    %v55 = vshrl.u32 %v54, 7
    %v56 = vsub.s32 0, %v55
    %v57 = vrot.slane %v47, %v56
    %vm60 = vcmask 261120
    %v62 = vsel %vm60, %v44, 0
    %v65 = vsel %vm60, %v41, 0
    %67 = vmatprep.subr.mxu0 0.0
    %68 = vmatpush1.xpose.msra.mxu0 0.0
    %69 = vmatprep.subr.mxu0 0.0
    %70 = vmatpush1.xpose.msra.mxu0 0.0
    %71 = vmatprep.subr.mxu0 0.0
    %72 = vmatpush1.xpose.msra.mxu0 0.0
    %73 = vmatprep.subr.mxu0 0.0
    %74 = vmatpush1.xpose.msra.mxu0 0.0
    %75 = vmatprep.subr.mxu0 0.0
    %76 = vmatpush1.xpose.msra.mxu0 0.0
    %77 = vmatprep.subr.mxu0 0.0
    %78 = vmatpush1.xpose.msra.mxu0 0.0
    %79 = vmatprep.subr.mxu0 0.0
    %80 = vmatpush1.xpose.msra.mxu0 0.0
    %81 = vmatprep.subr.mxu0 0.0
    %82 = vmatpush1.xpose.msra.mxu0 0.0
    %83 = vmatprep.subr.mxu0 0.0
    %84 = vmatpush1.xpose.msra.mxu0 0.0
    %85 = vmatprep.subr.mxu0 0.0
    %86 = vmatpush1.xpose.msra.mxu0 0.0
    %87 = vmatprep.subr.mxu0 0.0
    %88 = vmatpush1.xpose.msra.mxu0 0.0
    %89 = vmatprep.subr.mxu0 0.0
    %90 = vmatpush1.xpose.msra.mxu0 0.0
    %91 = vmatprep.subr.mxu0 0.0
    %92 = vmatpush1.xpose.msra.mxu0 0.0
    %93 = vmatprep.subr.mxu0 0.0
    %94 = vmatpush1.xpose.msra.mxu0 0.0
    %95 = vmatprep.subr.mxu0 0.0
    %96 = vmatpush1.xpose.msra.mxu0 0.0
    %97 = vmatprep.subr.mxu0 0.0
    %98 = vmatpush1.xpose.msra.mxu0 %v65
    %99 = vmatprep.subr.mxu0 0.0
    %100 = vmatpush2.xpose.msra.mxu0 0.0
    %101 = vmatprep.subr.mxu0 0.0
    %102 = vmatpush2.xpose.msra.mxu0 0.0
    %103 = vmatprep.subr.mxu0 0.0
    %104 = vmatpush2.xpose.msra.mxu0 0.0
    %105 = vmatprep.subr.mxu0 0.0
    %106 = vmatpush2.xpose.msra.mxu0 0.0
    %107 = vmatprep.subr.mxu0 0.0
    %108 = vmatpush2.xpose.msra.mxu0 0.0
    %109 = vmatprep.subr.mxu0 0.0
    %110 = vmatpush2.xpose.msra.mxu0 0.0
    %111 = vmatprep.subr.mxu0 0.0
    %112 = vmatpush2.xpose.msra.mxu0 0.0
    %113 = vmatprep.subr.mxu0 0.0
    %114 = vmatpush2.xpose.msra.mxu0 0.0
    %115 = vmatprep.subr.mxu0 0.0
    %116 = vmatpush2.xpose.msra.mxu0 0.0
    %117 = vmatprep.subr.mxu0 0.0
    %118 = vmatpush2.xpose.msra.mxu0 0.0
    %119 = vmatprep.subr.mxu0 0.0
    %120 = vmatpush2.xpose.msra.mxu0 0.0
    %121 = vmatprep.subr.mxu0 0.0
    %122 = vmatpush2.xpose.msra.mxu0 0.0
    %123 = vmatprep.subr.mxu0 0.0
    %124 = vmatpush2.xpose.msra.mxu0 0.0
    %125 = vmatprep.subr.mxu0 0.0
    %126 = vmatpush2.xpose.msra.mxu0 0.0
    %127 = vmatprep.subr.mxu0 0.0
    %128 = vmatpush2.xpose.msra.mxu0 0.0
    %129 = vmatprep.subr.mxu0 0.0
    %130 = vmatpush2.xpose.msra.mxu0 0.0
    %131 = vmatprep.mubr.f32.mxu0 0.0
    %132 = vmatmul.mubr.f32.gmra.mxu0 %v62
    %v133 = vpop.f32.mrf.mxu0
    %v134 = vadd.f32 %v53, %v133
    %v135 = vpop.f32.mrf.mxu0
    %136 = vdwg.mxu0
    %v138 = vsel %vm60, %v45, 0
    %v141 = vsel %vm60, %v42, 0
    %143 = vmatprep.subr.mxu0 0.0
    %144 = vmatpush1.xpose.msra.mxu0 0.0
    %145 = vmatprep.subr.mxu0 0.0
    %146 = vmatpush1.xpose.msra.mxu0 0.0
    %147 = vmatprep.subr.mxu0 0.0
    %148 = vmatpush1.xpose.msra.mxu0 0.0
    %149 = vmatprep.subr.mxu0 0.0
    %150 = vmatpush1.xpose.msra.mxu0 0.0
    %151 = vmatprep.subr.mxu0 0.0
    %152 = vmatpush1.xpose.msra.mxu0 0.0
    %153 = vmatprep.subr.mxu0 0.0
    %154 = vmatpush1.xpose.msra.mxu0 0.0
    %155 = vmatprep.subr.mxu0 0.0
    %156 = vmatpush1.xpose.msra.mxu0 0.0
    %157 = vmatprep.subr.mxu0 0.0
    %158 = vmatpush1.xpose.msra.mxu0 0.0
    %159 = vmatprep.subr.mxu0 0.0
    %160 = vmatpush1.xpose.msra.mxu0 0.0
    %161 = vmatprep.subr.mxu0 0.0
    %162 = vmatpush1.xpose.msra.mxu0 0.0
    %163 = vmatprep.subr.mxu0 0.0
    %164 = vmatpush1.xpose.msra.mxu0 0.0
    %165 = vmatprep.subr.mxu0 0.0
    %166 = vmatpush1.xpose.msra.mxu0 0.0
    %167 = vmatprep.subr.mxu0 0.0
    %168 = vmatpush1.xpose.msra.mxu0 0.0
    %169 = vmatprep.subr.mxu0 0.0
    %170 = vmatpush1.xpose.msra.mxu0 0.0
    %171 = vmatprep.subr.mxu0 0.0
    %172 = vmatpush1.xpose.msra.mxu0 0.0
    %173 = vmatprep.subr.mxu0 0.0
    %174 = vmatpush1.xpose.msra.mxu0 %v141
    %175 = vmatprep.subr.mxu0 0.0
    %176 = vmatpush2.xpose.msra.mxu0 0.0
    %177 = vmatprep.subr.mxu0 0.0
    %178 = vmatpush2.xpose.msra.mxu0 0.0
    %179 = vmatprep.subr.mxu0 0.0
    %180 = vmatpush2.xpose.msra.mxu0 0.0
    %181 = vmatprep.subr.mxu0 0.0
    %182 = vmatpush2.xpose.msra.mxu0 0.0
    %183 = vmatprep.subr.mxu0 0.0
    %184 = vmatpush2.xpose.msra.mxu0 0.0
    %185 = vmatprep.subr.mxu0 0.0
    %186 = vmatpush2.xpose.msra.mxu0 0.0
    %187 = vmatprep.subr.mxu0 0.0
    %188 = vmatpush2.xpose.msra.mxu0 0.0
    %189 = vmatprep.subr.mxu0 0.0
    %190 = vmatpush2.xpose.msra.mxu0 0.0
    %191 = vmatprep.subr.mxu0 0.0
    %192 = vmatpush2.xpose.msra.mxu0 0.0
    %193 = vmatprep.subr.mxu0 0.0
    %194 = vmatpush2.xpose.msra.mxu0 0.0
    %195 = vmatprep.subr.mxu0 0.0
    %196 = vmatpush2.xpose.msra.mxu0 0.0
    %197 = vmatprep.subr.mxu0 0.0
    %198 = vmatpush2.xpose.msra.mxu0 0.0
    %199 = vmatprep.subr.mxu0 0.0
    %200 = vmatpush2.xpose.msra.mxu0 0.0
    %201 = vmatprep.subr.mxu0 0.0
    %202 = vmatpush2.xpose.msra.mxu0 0.0
    %203 = vmatprep.subr.mxu0 0.0
    %204 = vmatpush2.xpose.msra.mxu0 0.0
    %205 = vmatprep.subr.mxu0 0.0
    %206 = vmatpush2.xpose.msra.mxu0 0.0
    %207 = vmatprep.mubr.f32.mxu0 0.0
    %208 = vmatmul.mubr.f32.gmra.mxu0 %v138
    %v209 = vpop.f32.mrf.mxu0
    %v210 = vadd.f32 %v57, %v209
    %v211 = vpop.f32.mrf.mxu0
    %212 = vdwg.mxu0
    %vm213 = vcmask 64512
    %v214 = vsel %vm213, %v134, -inf
    %215 = vmax.xlane.f32.xlu0 %v214
    %v216 = vpop.xlane.xlu0 %215
    %v217 = vsel %vm213, %v210, -inf
    %218 = vmax.xlane.f32.xlu0 %v217
    %v219 = vpop.xlane.xlu0 %218
    %v220 = vsub.f32 %v134, %v216
    %v221 = vsub.f32 %v210, %v219
    %v222 = vmul.f32 %v220, 1.442695
    %v223 = vpow.pop %v222
    %v224 = vmul.f32 %v221, 1.442695
    %v225 = vpow.pop %v224
    %v226 = vsel %vm213, %v223, 0.0
    %227 = vadd.xlane.f32.xlu0 %v226
    %v228 = vpop.xlane.xlu0 %227
    %v229 = vsel %vm213, %v225, 0.0
    %230 = vadd.xlane.f32.xlu0 %v229
    %v231 = vpop.xlane.xlu0 %230
    %v232 = vrcp.pop %v228
    %v233 = vrcp.pop %v231
    %v234 = vmul.f32 %v228, %v232
    %v235 = vmul.f32 %v231, %v233
    %v236 = vsub.f32 2.0, %v234
    %v237 = vsub.f32 2.0, %v235
    %v238 = vmul.f32 %v232, %v236
    %v239 = vmul.f32 %v233, %v237
    %v240 = vmul.f32 %v223, %v238
    %v241 = vmul.f32 %v225, %v239
    %v243 = vsel %vm213, %v240, 0
    %245 = vmatprep.subr.mxu0 0.0
    %246 = vmatpush1.msra.mxu0 0.0
    %247 = vmatprep.subr.mxu0 0.0
    %248 = vmatpush1.msra.mxu0 0.0
    %249 = vmatprep.subr.mxu0 0.0
    %250 = vmatpush1.msra.mxu0 0.0
    %251 = vmatprep.subr.mxu0 0.0
    %252 = vmatpush1.msra.mxu0 0.0
    %253 = vmatprep.subr.mxu0 0.0
    %254 = vmatpush1.msra.mxu0 0.0
    %255 = vmatprep.subr.mxu0 0.0
    %256 = vmatpush1.msra.mxu0 0.0
    %257 = vmatprep.subr.mxu0 0.0
    %258 = vmatpush1.msra.mxu0 0.0
    %259 = vmatprep.subr.mxu0 0.0
    %260 = vmatpush1.msra.mxu0 0.0
    %261 = vmatprep.subr.mxu0 0.0
    %262 = vmatpush1.msra.mxu0 0.0
    %263 = vmatprep.subr.mxu0 0.0
    %264 = vmatpush1.msra.mxu0 0.0
    %265 = vmatprep.subr.mxu0 0.0
    %266 = vmatpush1.msra.mxu0 0.0
    %267 = vmatprep.subr.mxu0 0.0
    %268 = vmatpush1.msra.mxu0 0.0
    %269 = vmatprep.subr.mxu0 0.0
    %270 = vmatpush1.msra.mxu0 0.0
    %271 = vmatprep.subr.mxu0 0.0
    %272 = vmatpush1.msra.mxu0 0.0
    %273 = vmatprep.subr.mxu0 0.0
    %274 = vmatpush1.msra.mxu0 0.0
    %275 = vmatprep.subr.mxu0 0.0
    %276 = vmatpush1.msra.mxu0 %v41
    %277 = vmatprep.subr.mxu0 0.0
    %278 = vmatpush2.msra.mxu0 0.0
    %279 = vmatprep.subr.mxu0 0.0
    %280 = vmatpush2.msra.mxu0 0.0
    %281 = vmatprep.subr.mxu0 0.0
    %282 = vmatpush2.msra.mxu0 0.0
    %283 = vmatprep.subr.mxu0 0.0
    %284 = vmatpush2.msra.mxu0 0.0
    %285 = vmatprep.subr.mxu0 0.0
    %286 = vmatpush2.msra.mxu0 0.0
    %287 = vmatprep.subr.mxu0 0.0
    %288 = vmatpush2.msra.mxu0 0.0
    %289 = vmatprep.subr.mxu0 0.0
    %290 = vmatpush2.msra.mxu0 0.0
    %291 = vmatprep.subr.mxu0 0.0
    %292 = vmatpush2.msra.mxu0 0.0
    %293 = vmatprep.subr.mxu0 0.0
    %294 = vmatpush2.msra.mxu0 0.0
    %295 = vmatprep.subr.mxu0 0.0
    %296 = vmatpush2.msra.mxu0 0.0
    %297 = vmatprep.subr.mxu0 0.0
    %298 = vmatpush2.msra.mxu0 0.0
    %299 = vmatprep.subr.mxu0 0.0
    %300 = vmatpush2.msra.mxu0 0.0
    %301 = vmatprep.subr.mxu0 0.0
    %302 = vmatpush2.msra.mxu0 0.0
    %303 = vmatprep.subr.mxu0 0.0
    %304 = vmatpush2.msra.mxu0 0.0
    %305 = vmatprep.subr.mxu0 0.0
    %306 = vmatpush2.msra.mxu0 0.0
    %307 = vmatprep.subr.mxu0 0.0
    %308 = vmatpush2.msra.mxu0 0.0
    %309 = vmatprep.mubr.f32.mxu0 0.0
    %310 = vmatmul.mubr.f32.gmra.mxu0 %v243
    %v311 = vpop.f32.mrf.mxu0
    %v312 = vadd.f32 0.0, %v311
    %v313 = vpop.f32.mrf.mxu0
    %314 = vdwg.mxu0
    %v316 = vsel %vm213, %v241, 0
    %318 = vmatprep.subr.mxu0 0.0
    %319 = vmatpush1.msra.mxu0 0.0
    %320 = vmatprep.subr.mxu0 0.0
    %321 = vmatpush1.msra.mxu0 0.0
    %322 = vmatprep.subr.mxu0 0.0
    %323 = vmatpush1.msra.mxu0 0.0
    %324 = vmatprep.subr.mxu0 0.0
    %325 = vmatpush1.msra.mxu0 0.0
    %326 = vmatprep.subr.mxu0 0.0
    %327 = vmatpush1.msra.mxu0 0.0
    %328 = vmatprep.subr.mxu0 0.0
    %329 = vmatpush1.msra.mxu0 0.0
    %330 = vmatprep.subr.mxu0 0.0
    %331 = vmatpush1.msra.mxu0 0.0
    %332 = vmatprep.subr.mxu0 0.0
    %333 = vmatpush1.msra.mxu0 0.0
    %334 = vmatprep.subr.mxu0 0.0
    %335 = vmatpush1.msra.mxu0 0.0
    %336 = vmatprep.subr.mxu0 0.0
    %337 = vmatpush1.msra.mxu0 0.0
    %338 = vmatprep.subr.mxu0 0.0
    %339 = vmatpush1.msra.mxu0 0.0
    %340 = vmatprep.subr.mxu0 0.0
    %341 = vmatpush1.msra.mxu0 0.0
    %342 = vmatprep.subr.mxu0 0.0
    %343 = vmatpush1.msra.mxu0 0.0
    %344 = vmatprep.subr.mxu0 0.0
    %345 = vmatpush1.msra.mxu0 0.0
    %346 = vmatprep.subr.mxu0 0.0
    %347 = vmatpush1.msra.mxu0 0.0
    %348 = vmatprep.subr.mxu0 0.0
    %349 = vmatpush1.msra.mxu0 %v42
    %350 = vmatprep.subr.mxu0 0.0
    %351 = vmatpush2.msra.mxu0 0.0
    %352 = vmatprep.subr.mxu0 0.0
    %353 = vmatpush2.msra.mxu0 0.0
    %354 = vmatprep.subr.mxu0 0.0
    %355 = vmatpush2.msra.mxu0 0.0
    %356 = vmatprep.subr.mxu0 0.0
    %357 = vmatpush2.msra.mxu0 0.0
    %358 = vmatprep.subr.mxu0 0.0
    %359 = vmatpush2.msra.mxu0 0.0
    %360 = vmatprep.subr.mxu0 0.0
    %361 = vmatpush2.msra.mxu0 0.0
    %362 = vmatprep.subr.mxu0 0.0
    %363 = vmatpush2.msra.mxu0 0.0
    %364 = vmatprep.subr.mxu0 0.0
    %365 = vmatpush2.msra.mxu0 0.0
    %366 = vmatprep.subr.mxu0 0.0
    %367 = vmatpush2.msra.mxu0 0.0
    %368 = vmatprep.subr.mxu0 0.0
    %369 = vmatpush2.msra.mxu0 0.0
    %370 = vmatprep.subr.mxu0 0.0
    %371 = vmatpush2.msra.mxu0 0.0
    %372 = vmatprep.subr.mxu0 0.0
    %373 = vmatpush2.msra.mxu0 0.0
    %374 = vmatprep.subr.mxu0 0.0
    %375 = vmatpush2.msra.mxu0 0.0
    %376 = vmatprep.subr.mxu0 0.0
    %377 = vmatpush2.msra.mxu0 0.0
    %378 = vmatprep.subr.mxu0 0.0
    %379 = vmatpush2.msra.mxu0 0.0
    %380 = vmatprep.subr.mxu0 0.0
    %381 = vmatpush2.msra.mxu0 0.0
    %382 = vmatprep.mubr.f32.mxu0 0.0
    %383 = vmatmul.mubr.f32.gmra.mxu0 %v316
    %v384 = vpop.f32.mrf.mxu0
    %v385 = vadd.f32 0.0, %v384
    %v386 = vpop.f32.mrf.mxu0
    %387 = vdwg.mxu0
    %388 = vst.msk [vmem:[#allocation7] sm:$0xff] %vm60, %v44
    %389 = vst.msk [vmem:[#allocation7 + $0x8] sm:$0xff] %vm60, %v45
    %s390 = scalar_lea.vmem [#allocation7], 16
    %391 = vst.msk [vmem:[%s390] sm:$0xff] %vm60, %v312
    %392 = vst.msk [vmem:[%s390 + $0x8] sm:$0xff] %vm60, %v385
    %v393 = vadd.f32 %v44, %v312
    %v394 = vadd.f32 %v45, %v385
    %s395 = scalar_lea.vmem [#allocation7], 32
    %396 = vst.msk [vmem:[%s395] sm:$0xff] %vm60, %v393
    %397 = vst.msk [vmem:[%s395 + $0x8] sm:$0xff] %vm60, %v394
    %v398 = vsub.f32 %v44, %v312
    %v399 = vsub.f32 %v45, %v385
    %s400 = scalar_lea.vmem [#allocation7], 48
    %401 = vst.msk [vmem:[%s400] sm:$0xff] %vm60, %v398
    %402 = vst.msk [vmem:[%s400 + $0x8] sm:$0xff] %vm60, %v399
    %v403 = vmul.f32 %v44, %v312
    %v404 = vmul.f32 %v45, %v385
    %s405 = scalar_lea.vmem [#allocation7], 64
    %406 = vst.msk [vmem:[%s405] sm:$0xff] %vm60, %v403
    %407 = vst.msk [vmem:[%s405 + $0x8] sm:$0xff] %vm60, %v404
    // Predicated region
    $region18: #{tpu_custom_call.1} parent=1 // pred_check
      _
    $region19: #{tpu_custom_call.1} parent=1 // pred_check_branch
      %409 = sbr.rel (0) target = $region21
    $region20: #{tpu_custom_call.1} parent=1 // pred_region
      %s411 = ssub.s32 1280, 1280
      %412 = vsyncadd [#allocation4], %s411
      %s413 = sshll.u32 [#allocation7], 4
      %s414 = int_to_ptr.vmem [resolvable:$true] %s413
      %419 = dma.vmem_to_hbm [thread:$0]  %s414, 1280, %s2, [#allocation4], 128, 128, 8
    $region21: #{tpu_custom_call.1} parent=1 // pred_fallthru
      _
    // Predicated region
    $region22: #{tpu_custom_call.1} parent=1 // pred_check
      _
    $region23: #{tpu_custom_call.1} parent=1 // pred_check_branch
      %421 = sbr.rel (0) target = $region25
    $region24: #{tpu_custom_call.1} parent=1 // pred_region
      %422 = dma.done [#allocation4], 1280
    $region25: #{tpu_custom_call.1} parent=1 // pred_fallthru
      _
    %423 = vsyncpa [#allocation3], 1
    %424 = vsyncpa [#allocation6], 1
    %425 = vsyncpa [#allocation4], 1

</llo_original>
